<compile_context>
chip_gen: v6e
topology: v6e:2x2x1
jax: 0.10.0
libtpu: 0.0.40
codegen_flags: <defaults>
</compile_context>

<pallas_src>
import jax
import jax.numpy as jnp
from jax.experimental import pallas as pl
from jax.experimental.pallas import tpu as pltpu


def _select_first_kernel(x_hbm, o_hbm, copy_sem):
    # x_hbm: full (B, S, D) input left in HBM (memory_space=pl.ANY).
    # o_hbm: (S, D) output, also left in HBM.
    # Single descriptor-driven contiguous copy of the x[0] slab: HBM -> HBM,
    # no VMEM staging, no vector loads/stores on the TensorCore.
    cp = pltpu.make_async_copy(x_hbm.at[0], o_hbm, copy_sem)
    cp.start()
    cp.wait()


def actor_forward(x):
    """Pallas equivalent of Actor.forward: computes close_price = x[0]."""
    out_shape = jax.ShapeDtypeStruct(x.shape[1:], x.dtype)
    # Pure mem-bound copy: read x[0] once, write it once.
    slab_bytes = int(jnp.prod(jnp.array(x.shape[1:]))) * x.dtype.itemsize
    return pl.pallas_call(
        _select_first_kernel,
        out_shape=out_shape,
        # No grid: the kernel body runs exactly once and issues one DMA.
        in_specs=[pl.BlockSpec(memory_space=pl.ANY)],
        out_specs=pl.BlockSpec(memory_space=pl.ANY),
        scratch_shapes=[pltpu.SemaphoreType.DMA(())],
        cost_estimate=pl.CostEstimate(
            flops=0, transcendentals=0, bytes_accessed=2 * slab_bytes),
    )(x)


if __name__ == "__main__":
    key = jax.random.PRNGKey(0)
    # Small observation tensor: leading axis B=4, seq=16, hidden=128.
    x = jax.random.normal(key, (4, 16, 128), dtype=jnp.float32)

    close_price = actor_forward(x)
    jax.block_until_ready(close_price)

    # Correctness check against plain JAX reference of `x[0]`.
    ref = x[0]
    assert close_price.shape == ref.shape
    assert jnp.array_equal(close_price, ref)

    print("KERNEL_OK")
</pallas_src>

<mosaic_0001>
module attributes {stable_mosaic.version = 11 : i64} {
  func.func @_select_first_kernel(%arg0: memref<4x16x128xf32, #tpu.memory_space<any>>, %arg1: memref<16x128xf32, #tpu.memory_space<any>>, %arg2: memref<!tpu.dma_semaphore, #tpu.memory_space<semaphore_mem>>) attributes {dimension_semantics = [], scalar_prefetch = 0 : i64, scratch_operands = 1 : i64, tpu.core_type = #tpu.core_type<tc>} {
    %c0_i32 = arith.constant 0 : i32
    %c0_i32_0 = arith.constant 0 : i32
    %c0_i32_1 = arith.constant 0 : i32
    %0 = tpu.memref_slice %arg0[%c0_i32, %c0_i32_0, %c0_i32_1] : memref<4x16x128xf32, #tpu.memory_space<any>> -> memref<1x16x128xf32, #tpu.memory_space<any>>
    %1 = tpu.memref_squeeze %0 : memref<1x16x128xf32, #tpu.memory_space<any>> -> memref<16x128xf32, #tpu.memory_space<any>>
    tpu.enqueue_dma source(%1 : memref<16x128xf32, #tpu.memory_space<any>>) target(%arg1 : memref<16x128xf32, #tpu.memory_space<any>>) target_semaphore(%arg2 : memref<!tpu.dma_semaphore, #tpu.memory_space<semaphore_mem>>)
    %c0_i32_2 = arith.constant 0 : i32
    %c0_i32_3 = arith.constant 0 : i32
    %c0_i32_4 = arith.constant 0 : i32
    %2 = tpu.memref_slice %arg0[%c0_i32_2, %c0_i32_3, %c0_i32_4] : memref<4x16x128xf32, #tpu.memory_space<any>> -> memref<1x16x128xf32, #tpu.memory_space<any>>
    %3 = tpu.memref_squeeze %2 : memref<1x16x128xf32, #tpu.memory_space<any>> -> memref<16x128xf32, #tpu.memory_space<any>>
    tpu.wait_dma2 semaphore(%arg2 : memref<!tpu.dma_semaphore, #tpu.memory_space<semaphore_mem>>) src(%3 : memref<16x128xf32, #tpu.memory_space<any>>) dst(%arg1 : memref<16x128xf32, #tpu.memory_space<any>>)
    return
  }
}

</mosaic_0001>

<llo_original>
// kernel: tpu_custom_call.1
$region0: #{tpu_custom_call.1}
  #allocation0 [shape = 'u32[]', space=smem, size = 0x4, offset = 0x4, fixed_abs, tag = 'smem constant byte address 0x4 - core index']
  #allocation1 [shape = 'u32[144,128]{1,0:T(1,128)}', space=vmem, size = 0x12000, scoped, tag = 'internal scratch']
  #allocation2 [shape = 's32[1]{0}', space=sflag, size = 0x4, scoped, tag = 'scratch operand']
  #allocation3 [shape = 's32[]', space=sflag, size = 0x4, offset = 0, fixed_abs, tag = 'sflag constant byte address 0x0 - dummy sync flag']
  #allocation4 [shape = 'u32[0]{0}', space=smem, size = 0, offset = 0, fixed_abs, tag = 'smem constant byte address 0x0 - null']
  %s0 = inlined_call_operand.hbm [shape: f32[4,16,128], index: 0, kind: input, shape index: {}]
  %s1 = inlined_call_operand.hbm [shape: f32[16,128], index: 1, kind: output, shape index: {}]
  %s2 = sld [smem:[#allocation0]]
  $region2: #{tpu_custom_call.1} parent=0
    _
  %s4 = ssub.s32 1, %s2
  %s5 = scalar_select 0, %s4, %s2
  %s7 = sshll.u32 1, 14
  %s8 = sxor.u32 4294967295, %s7
  %12 = dma.general %s0, 256, %s1, [#allocation2], 131072, [#allocation4], 0, 0
  %s13 = smul.u32 16, 1
  %s14 = sshll.u32 %s13, 4
  %15 = dma.done [#allocation2], %s14
  %16 = vsyncmov [#allocation2]
  %s17 = vpop.sfrf %16
  %p18 = scmp.eq.s32.totalorder %s17, 0
  %p19 = pneg %p18
  %21 = shalt.err (%p19)

</llo_original>
